<compile_context>
chip_gen: v7x
topology: tpu7x:2x2x1
jax: 0.10.0
libtpu: 0.0.40
codegen_flags: <defaults>
</compile_context>

<pallas_src>
import jax
import jax.numpy as jnp
from jax import lax
from jax.experimental import pallas as pl
from jax.experimental.pallas import tpu as pltpu

EPS = 1e-5
_VMEM_LIMIT = 32 * 1024 * 1024  # safe on v5e/v6e (128 MiB) and v7x (64 MiB)


# --------------------------- Pass 1: x statistics ----------------------------
def _stats_kernel(x_ref, s_ref, g_ref):
    # x_ref: (1, C, tt) tile (batch bi, time tile ti)
    # s_ref: (1, C, 1)  per-batch running sum_t x
    # g_ref: (1, C, C)  per-batch running x @ x.T
    @pl.when(pl.program_id(1) == 0)
    def _init():
        s_ref[...] = jnp.zeros_like(s_ref)
        g_ref[...] = jnp.zeros_like(g_ref)

    x = x_ref[0].astype(jnp.float32)                                # (C, tt)
    s_ref[0] = s_ref[0] + jnp.sum(x, axis=1, keepdims=True)
    g_ref[0] = g_ref[0] + jnp.dot(x, x.T, preferred_element_type=jnp.float32)


# -------------------- Pass 2: (BN-folded) conv + bias + write ----------------
def _apply_kernel(x_ref, w_ref, b_ref, o_ref):
    # x_ref: (1, C, tt)   w_ref: (J, C)   b_ref: (J, 1)   o_ref: (1, J, tt)
    x = x_ref[0].astype(jnp.float32)                                # (C, tt)
    y = jnp.dot(w_ref[...], x, preferred_element_type=jnp.float32) + b_ref[...]
    o_ref[0] = y.astype(o_ref.dtype)


def _round_up(a, m):
    return ((a + m - 1) // m) * m


def spatial_filter_forward(x, weight, bias=None, apply_batchnorm=True, *,
                           max_tile_t=4096, eps=EPS):
    """SpatialFilter.forward.

    x:      (B, C, T)  float32 or bfloat16
    weight: (J, C)     Conv1d(C->J, kernel_size=1).weight (kernel dim squeezed)
    bias:   (J,) or None
    Returns (B, J, T) in x.dtype.
    """
    B, C, T = x.shape
    J = weight.shape[0]
    w = weight.astype(jnp.float32).reshape(J, C)
    b = (bias.astype(jnp.float32).reshape(J) if bias is not None
         else jnp.zeros((J,), jnp.float32))

    # Lane-dense time tile: largest multiple of 128 up to max_tile_t. Tiles are
    # tiny ((C+J)*tt*4 bytes double-buffered), so big tiles cost little VMEM and
    # amortize the ~0.35us/grid-step overhead.  T is zero-padded to a tile
    # multiple; the stats are pad-invariant and the output is sliced back.
    tt = max(128, (min(max_tile_t, _round_up(T, 128)) // 128) * 128)
    nt = -(-T // tt)
    T_pad = nt * tt
    if T_pad != T:
        x = jnp.pad(x, ((0, 0), (0, 0), (0, T_pad - T)))

    x_spec = pl.BlockSpec((1, C, tt), lambda bi, ti: (bi, 0, ti))

    if apply_batchnorm:
        s_part, g_part = pl.pallas_call(
            _stats_kernel,
            out_shape=(jax.ShapeDtypeStruct((B, C, 1), jnp.float32),
                       jax.ShapeDtypeStruct((B, C, C), jnp.float32)),
            grid=(B, nt),
            in_specs=[x_spec],
            out_specs=(pl.BlockSpec((1, C, 1), lambda bi, ti: (bi, 0, 0)),
                       pl.BlockSpec((1, C, C), lambda bi, ti: (bi, 0, 0))),
            compiler_params=pltpu.CompilerParams(
                dimension_semantics=("parallel", "arbitrary"),
                vmem_limit_bytes=_VMEM_LIMIT),
        )(x)
        # Derive per-branch batch statistics of y = W x + b in plain JAX
        # (only (C,), (C,C), (J,C)-sized math).
        s = jnp.sum(s_part[:, :, 0], axis=0)                        # (C,)
        g = jnp.sum(g_part, axis=0)                                 # (C, C)
        n = float(B * T)                                            # valid elems only
        wx = w @ s                                                  # (J,)
        mean = wx / n + b
        e_y2 = (jnp.einsum("jc,cd,jd->j", w, g, w) + 2.0 * b * wx) / n + b * b
        var = jnp.maximum(e_y2 - mean * mean, 0.0)                  # clamp cancellation
        inv = lax.rsqrt(var + eps)
        # Fold BN into the conv parameters: out = (W'x + b')
        w_eff = w * inv[:, None]
        b_eff = (b - mean) * inv
    else:
        w_eff = w
        b_eff = b

    out = pl.pallas_call(
        _apply_kernel,
        out_shape=jax.ShapeDtypeStruct((B, J, T_pad), x.dtype),
        grid=(B, nt),
        in_specs=[x_spec,
                  pl.BlockSpec((J, C), lambda bi, ti: (0, 0)),
                  pl.BlockSpec((J, 1), lambda bi, ti: (0, 0))],
        out_specs=pl.BlockSpec((1, J, tt), lambda bi, ti: (bi, 0, ti)),
        compiler_params=pltpu.CompilerParams(
            dimension_semantics=("parallel", "parallel"),
            vmem_limit_bytes=_VMEM_LIMIT),
    )(x, w_eff, b_eff.reshape(J, 1))

    if T_pad != T:
        out = out[:, :, :T]
    return out


# ----------------------- pure-JAX reference (for checking) -------------------
def reference_forward(x, weight, bias=None, apply_batchnorm=True, eps=EPS):
    y = jnp.einsum("jc,bct->bjt", weight.astype(jnp.float32), x.astype(jnp.float32))
    if bias is not None:
        y = y + bias[None, :, None]
    if apply_batchnorm:
        mean = jnp.mean(y, axis=(0, 2), keepdims=True)
        var = jnp.mean((y - mean) ** 2, axis=(0, 2), keepdims=True)
        y = (y - mean) / jnp.sqrt(var + eps)
    return y


if __name__ == "__main__":
    # Small shapes consistent with the module:
    #   batch=2, n_eeg_channels=8, n_branches=16, time=384.
    B, C, J, T = 2, 8, 16, 384

    key = jax.random.PRNGKey(0)
    kx, kw, kb = jax.random.split(key, 3)
    x = jax.random.normal(kx, (B, C, T), dtype=jnp.float32)
    w = jax.random.normal(kw, (J, C), dtype=jnp.float32) * 0.3   # Conv1d(C->J,1).weight
    b = jax.random.normal(kb, (J,), dtype=jnp.float32) * 0.1     # its bias

    # Default module config: spatial_bias=True, apply_batchnorm=True.
    out = spatial_filter_forward(x, w, b, apply_batchnorm=True)
    out = jax.block_until_ready(out)
    ref = reference_forward(x, w, b, apply_batchnorm=True)
    assert out.shape == (B, J, T), out.shape
    err = float(jnp.max(jnp.abs(out - ref)))
    assert jnp.allclose(out, ref, atol=1e-4, rtol=1e-4), err

    # No-bias / no-batchnorm configuration.
    out2 = spatial_filter_forward(x, w, None, apply_batchnorm=False)
    out2 = jax.block_until_ready(out2)
    ref2 = reference_forward(x, w, None, apply_batchnorm=False)
    err2 = float(jnp.max(jnp.abs(out2 - ref2)))
    assert jnp.allclose(out2, ref2, atol=1e-4, rtol=1e-4), err2

    # Ragged time length (exercises the pad + slice path).
    T3 = 200
    x3 = jax.random.normal(kx, (B, C, T3), dtype=jnp.float32)
    out3 = spatial_filter_forward(x3, w, b, apply_batchnorm=True)
    out3 = jax.block_until_ready(out3)
    ref3 = reference_forward(x3, w, b, apply_batchnorm=True)
    err3 = float(jnp.max(jnp.abs(out3 - ref3)))
    assert out3.shape == (B, J, T3), out3.shape
    assert jnp.allclose(out3, ref3, atol=1e-4, rtol=1e-4), err3

    print("KERNEL_OK")
</pallas_src>

<mosaic_0001>
module attributes {stable_mosaic.version = 11 : i64} {
  func.func @_stats_kernel(%arg0: i32, %arg1: i32, %arg2: memref<1x8x384xf32, #tpu.memory_space<vmem>>, %arg3: memref<1x8x1xf32, #tpu.memory_space<vmem>>, %arg4: memref<1x8x8xf32, #tpu.memory_space<vmem>>) attributes {dimension_semantics = [#tpu.dimension_semantics<parallel>, #tpu.dimension_semantics<arbitrary>], iteration_bounds = array<i64: 2, 1>, scalar_prefetch = 0 : i64, scratch_operands = 0 : i64, tpu.core_type = #tpu.core_type<tc>, window_params = [{transform_indices = @transform_0, window_bounds = array<i64: 1, 8, 384>}, {transform_indices = @transform_1, window_bounds = array<i64: 1, 8, 1>}, {transform_indices = @transform_2, window_bounds = array<i64: 1, 8, 8>}]} {
    %c0_i32 = arith.constant 0 : i32
    %0 = arith.cmpi eq, %arg1, %c0_i32 : i32
    %1 = arith.extui %0 : i1 to i32
    %c0_i32_0 = arith.constant 0 : i32
    %2 = arith.cmpi ne, %1, %c0_i32_0 : i32
    scf.if %2 {
      %cst_16 = arith.constant 0.000000e+00 : f32
      %21 = vector.broadcast %cst_16 : f32 to vector<1x8x1xf32>
      %c0_17 = arith.constant 0 : index
      %c0_18 = arith.constant 0 : index
      %c0_19 = arith.constant 0 : index
      %22 = vector.load %arg3[%c0_17, %c0_18, %c0_19] : memref<1x8x1xf32, #tpu.memory_space<vmem>>, vector<1x8x1xf32>
      tpu.vector_store %arg3[%c0_17, %c0_18, %c0_19], %21 {strides = array<i32>} : memref<1x8x1xf32, #tpu.memory_space<vmem>>, vector<1x8x1xf32>,
      %cst_20 = arith.constant 0.000000e+00 : f32
      %23 = vector.broadcast %cst_20 : f32 to vector<1x8x8xf32>
      %c0_21 = arith.constant 0 : index
      %c0_22 = arith.constant 0 : index
      %c0_23 = arith.constant 0 : index
      %24 = vector.load %arg4[%c0_21, %c0_22, %c0_23] : memref<1x8x8xf32, #tpu.memory_space<vmem>>, vector<1x8x8xf32>
      tpu.vector_store %arg4[%c0_21, %c0_22, %c0_23], %23 {strides = array<i32>} : memref<1x8x8xf32, #tpu.memory_space<vmem>>, vector<1x8x8xf32>,
    } else {
    }
    %c0 = arith.constant 0 : index
    %c0_1 = arith.constant 0 : index
    %c0_2 = arith.constant 0 : index
    %3 = vector.load %arg2[%c0, %c0_1, %c0_2] : memref<1x8x384xf32, #tpu.memory_space<vmem>>, vector<1x8x384xf32>
    %4 = vector.shape_cast %3 : vector<1x8x384xf32> to vector<8x384xf32>
    %c0_3 = arith.constant 0 : index
    %c0_4 = arith.constant 0 : index
    %c0_5 = arith.constant 0 : index
    %5 = vector.load %arg3[%c0_3, %c0_4, %c0_5] : memref<1x8x1xf32, #tpu.memory_space<vmem>>, vector<1x8x1xf32>
    %6 = vector.shape_cast %5 : vector<1x8x1xf32> to vector<8x1xf32>
    %cst = arith.constant dense<0.000000e+00> : vector<8xf32>
    %7 = vector.multi_reduction <add>, %4, %cst [1] : vector<8x384xf32> to vector<8xf32>
    %8 = vector.shape_cast %7 : vector<8xf32> to vector<8x1xf32>
    %9 = arith.addf %6, %8 : vector<8x1xf32>
    %c0_6 = arith.constant 0 : index
    %c0_7 = arith.constant 0 : index
    %c0_8 = arith.constant 0 : index
    %10 = vector.load %arg3[%c0_6, %c0_7, %c0_8] : memref<1x8x1xf32, #tpu.memory_space<vmem>>, vector<1x8x1xf32>
    %11 = vector.shape_cast %10 : vector<1x8x1xf32> to vector<8x1xf32>
    %12 = vector.shape_cast %9 : vector<8x1xf32> to vector<1x8x1xf32>
    tpu.vector_store %arg3[%c0_6, %c0_7, %c0_8], %12 {strides = array<i32>} : memref<1x8x1xf32, #tpu.memory_space<vmem>>, vector<1x8x1xf32>,
    %c0_9 = arith.constant 0 : index
    %c0_10 = arith.constant 0 : index
    %c0_11 = arith.constant 0 : index
    %13 = vector.load %arg4[%c0_9, %c0_10, %c0_11] : memref<1x8x8xf32, #tpu.memory_space<vmem>>, vector<1x8x8xf32>
    %14 = vector.shape_cast %13 : vector<1x8x8xf32> to vector<8x8xf32>
    %15 = tpu.transpose %4, [1, 0] : vector<8x384xf32> -> vector<384x8xf32>
    %cst_12 = arith.constant dense<0.000000e+00> : vector<8x8xf32>
    %16 = tpu.matmul %4, %15, %cst_12 {dimension_numbers = #tpu.dot_dimension_numbers<[1], [0], [0], [1], [0, 0, 1, 1], [], []>} : vector<8x384xf32>, vector<384x8xf32>, vector<8x8xf32> -> vector<8x8xf32>
    %17 = arith.addf %14, %16 : vector<8x8xf32>
    %c0_13 = arith.constant 0 : index
    %c0_14 = arith.constant 0 : index
    %c0_15 = arith.constant 0 : index
    %18 = vector.load %arg4[%c0_13, %c0_14, %c0_15] : memref<1x8x8xf32, #tpu.memory_space<vmem>>, vector<1x8x8xf32>
    %19 = vector.shape_cast %18 : vector<1x8x8xf32> to vector<8x8xf32>
    %20 = vector.shape_cast %17 : vector<8x8xf32> to vector<1x8x8xf32>
    tpu.vector_store %arg4[%c0_13, %c0_14, %c0_15], %20 {strides = array<i32>} : memref<1x8x8xf32, #tpu.memory_space<vmem>>, vector<1x8x8xf32>,
    return
  }
  func.func @transform_0(%arg0: i32, %arg1: i32) -> (i32, i32, i32) {
    %c0_i32 = arith.constant 0 : i32
    %c0_i32_0 = arith.constant 0 : i32
    return %arg0, %c0_i32, %arg1 : i32, i32, i32
  }
  func.func @transform_1(%arg0: i32, %arg1: i32) -> (i32, i32, i32) {
    %c0_i32 = arith.constant 0 : i32
    %c0_i32_0 = arith.constant 0 : i32
    %c0_i32_1 = arith.constant 0 : i32
    return %arg0, %c0_i32, %c0_i32_0 : i32, i32, i32
  }
  func.func @transform_2(%arg0: i32, %arg1: i32) -> (i32, i32, i32) {
    %c0_i32 = arith.constant 0 : i32
    %c0_i32_0 = arith.constant 0 : i32
    %c0_i32_1 = arith.constant 0 : i32
    return %arg0, %c0_i32, %c0_i32_0 : i32, i32, i32
  }
}

</mosaic_0001>

<llo_original>
// kernel: tpu_custom_call.1
$region0: #{tpu_custom_call.1}
  #allocation0 [shape = 'u32[]', space=smem, size = 0x4, offset = 0x4, fixed_abs, tag = 'smem constant byte address 0x4 - core index']
  #allocation1 [shape = 'u32[144,128]{1,0:T(1,128)}', space=vmem, size = 0x12000, scoped, tag = 'internal scratch']
  %s0 = inlined_call_operand.hbm [shape: f32[2,8,384], index: 0, kind: input, shape index: {}]
  %s1 = inlined_call_operand.vmem [shape: f32[2,8,1], index: 1, kind: output, shape index: {0}]
  %s2 = inlined_call_operand.hbm [shape: f32[2,8,8], index: 2, kind: output, shape index: {1}]
  %3 = xla_tuple %s1, %s2
  %s4 = sld [smem:[#allocation0]]
  $region53: #{tpu_custom_call.1} parent=0
    _
  %s6 = ssub.s32 1, %s4
  %s7 = scalar_select 0, %s6, %s4
  $region1: #{tpu_custom_call.1} parent=0
    #allocation2 [shape = 'u8[24576]{0}', space=vmem, size = 0x6000, scoped, tag = 'input window, operand 0']
    #allocation3 [shape = 's32[2]{0}', space=sflag, size = 0x8, scoped, tag = 'scoped memory for tpu_custom_call.1']
    #allocation4 [shape = 's32[2]{0}', space=sflag, size = 0x8, scoped, tag = 'scoped memory for tpu_custom_call.1']
    #allocation5 [shape = 'u8[8192]{0}', space=vmem, size = 0x2000, scoped, tag = 'output window, operand 1']
    %8 = vsyncpa [#allocation3], 0
    %s9 = scalar_lea.sflag [#allocation3], 1
    %10 = vsyncpa %s9, 0
    %11 = vsyncpa [#allocation4], 0
    %s12 = scalar_lea.sflag [#allocation4], 1
    %13 = vsyncpa %s12, 0
    loop: start=0, step=1, limit=4
    $region2: #{tpu_custom_call.1} parent=1 // loop_pre_header
      _
    $region3: #{tpu_custom_call.1} parent=1 // loop_header
      %s15 = sphi 0, %s19
      %p16 = scmp.ge.s32.totalorder %s15, 4
      %s22 = sphi 0, %s34
      %s23 = sphi 0, %s30
      %s24 = sphi 0, %s22
      %s25 = sphi 0, %s23
      %s26 = sphi 0, %s24
      %s27 = sphi 0, %s25
      %s39 = sphi 0, %s41
      %s42 = sphi 0, %s39
      %s43 = sphi 0, %s42
      %s59 = sphi 0, %s43
      %s65 = sphi 0, %s67
      %s68 = sphi 0, %s65
      %s69 = sphi 0, %s68
      %s85 = sphi 0, %s69
      %s91 = sphi 0, %s93
      %s94 = sphi 0, %s91
      %s95 = sphi 0, %s94
      %s111 = sphi 0, %s95
    $region4: #{tpu_custom_call.1} parent=1 // loop_header_branch
      %18 = sbr.rel (%p16) target = $region8
    $region5: #{tpu_custom_call.1} parent=1 // loop_body
      %s20 = ssub.s32 %s15, 1
      %s21 = ssub.s32 %s15, 2
      %s28 = sadd.s32 1, %s23
      %p29 = scmp.ge.s32.totalorder %s28, 1
      %s30 = scalar_select %p29, 0, %s28
      %s31 = sadd.s32 1, %s22
      %s32 = scalar_select %p29, %s31, %s22
      %p33 = scmp.ge.s32.totalorder %s32, 2
      %s34 = scalar_select %p33, 0, %s32
      %s35 = ssub.s32 %s22, %s34
      %s36 = ssub.s32 %s23, %s30
      %s37 = sor.u32 %s35, %s36
      %p38 = scmp.eq.s32.totalorder %s37, 0
      %s40 = sadd.s32 %s39, 1
      %s41 = scalar_select %p38, %s39, %s40
      %p44 = pneg %p38
      %p45 = scmp.eq.s32.totalorder %s15, 1
      %p46 = por %p44, %p45
      %p47 = scmp.ne.s32.totalorder %s39, %s42
      %p48 = scmp.eq.s32.totalorder %s15, 0
      %p49 = por %p47, %p48
      %p50 = scmp.ne.s32.totalorder %s39, %s42
      %p51 = scmp.eq.s32.totalorder %s20, 1
      %p52 = por %p50, %p51
      %p53 = scmp.ne.s32.totalorder %s42, %s43
      %p54 = scmp.eq.s32.totalorder %s20, 0
      %p55 = por %p53, %p54
      %p56 = scmp.ne.s32.totalorder %s42, %s43
      %p57 = scmp.eq.s32.totalorder %s21, 1
      %p58 = por %p56, %p57
      %p60 = scmp.ne.s32.totalorder %s43, %s59
      %p61 = scmp.eq.s32.totalorder %s21, 0
      %p62 = por %p60, %p61
      %s63 = ssub.s32 %s22, %s34
      %p64 = scmp.eq.s32.totalorder %s63, 0
      %s66 = sadd.s32 %s65, 1
      %s67 = scalar_select %p64, %s65, %s66
      %p70 = pneg %p64
      %p71 = scmp.eq.s32.totalorder %s15, 1
      %p72 = por %p70, %p71
      %p73 = scmp.ne.s32.totalorder %s65, %s68
      %p74 = scmp.eq.s32.totalorder %s15, 0
      %p75 = por %p73, %p74
      %p76 = scmp.ne.s32.totalorder %s65, %s68
      %p77 = scmp.eq.s32.totalorder %s20, 1
      %p78 = por %p76, %p77
      %p79 = scmp.ne.s32.totalorder %s68, %s69
      %p80 = scmp.eq.s32.totalorder %s20, 0
      %p81 = por %p79, %p80
      %p82 = scmp.ne.s32.totalorder %s68, %s69
      %p83 = scmp.eq.s32.totalorder %s21, 1
      %p84 = por %p82, %p83
      %p86 = scmp.ne.s32.totalorder %s69, %s85
      %p87 = scmp.eq.s32.totalorder %s21, 0
      %p88 = por %p86, %p87
      %s89 = ssub.s32 %s22, %s34
      %p90 = scmp.eq.s32.totalorder %s89, 0
      %s92 = sadd.s32 %s91, 1
      %s93 = scalar_select %p90, %s91, %s92
      %p96 = pneg %p90
      %p97 = scmp.eq.s32.totalorder %s15, 1
      %p98 = por %p96, %p97
      %p99 = scmp.ne.s32.totalorder %s91, %s94
      %p100 = scmp.eq.s32.totalorder %s15, 0
      %p101 = por %p99, %p100
      %p102 = scmp.ne.s32.totalorder %s91, %s94
      %p103 = scmp.eq.s32.totalorder %s20, 1
      %p104 = por %p102, %p103
      %p105 = scmp.ne.s32.totalorder %s94, %s95
      %p106 = scmp.eq.s32.totalorder %s20, 0
      %p107 = por %p105, %p106
      %p108 = scmp.ne.s32.totalorder %s94, %s95
      %p109 = scmp.eq.s32.totalorder %s21, 1
      %p110 = por %p108, %p109
      %p112 = scmp.ne.s32.totalorder %s95, %s111
      %p113 = scmp.eq.s32.totalorder %s21, 0
      %p114 = por %p112, %p113
      %p115 = scmp.le.s32.totalorder 1, %s15
      %p116 = scmp.lt.s32.totalorder %s15, 3
      %p117 = pnand %p115, %p116
      %p118 = pneg %p117
      // Predicated region
      $region9: #{tpu_custom_call.1} parent=5 // pred_check
        _
      $region10: #{tpu_custom_call.1} parent=5 // pred_check_branch
        %120 = sbr.rel (%p117) target = $region12
      $region11: #{tpu_custom_call.1} parent=5 // pred_region
        %s121 = ssub.s32 %s15, 1
      $region12: #{tpu_custom_call.1} parent=5 // pred_fallthru
        _
      %p122 = scmp.lt.s32.totalorder %s15, 2
      // Predicated region
      $region13: #{tpu_custom_call.1} parent=5 // pred_check
        %p123 = pneg %p122
      $region14: #{tpu_custom_call.1} parent=5 // pred_check_branch
        %125 = sbr.rel (%p123) target = $region16
      $region15: #{tpu_custom_call.1} parent=5 // pred_region
        // Predicated region
        $region17: #{tpu_custom_call.1} parent=15 // pred_check
          %p126 = pneg %p49
        $region18: #{tpu_custom_call.1} parent=15 // pred_check_branch
          %128 = sbr.rel (%p126) target = $region20
        $region19: #{tpu_custom_call.1} parent=15 // pred_region
          %s129 = sand.u32 %s39, 1
          %s130 = scalar_lea.sflag [#allocation3], %s129
          %s131 = sand.u32 %s39, 1
          %s132 = smul.addr %s131, 24
          %s133 = scalar_lea.vmem [#allocation2], %s132
          %s134 = smul.u32 3, %s23
          %s136 = ssub.s32 384, 384
          %137 = vsyncadd %s130, %s136
          %s138 = smul.addr %s22, 3
          %s139 = sadd.s32 %s134, %s138
          %s140 = smul.addr %s139, 128
          %s141 = scalar_lea.hbm %s0, %s140
          %s143 = sshll.u32 %s133, 4
          %s144 = int_to_ptr.vmem [resolvable:$true] %s143
          %146 = dma.hbm_to_vmem [thread:$0]  %s141, 384, %s144, %s130
        $region20: #{tpu_custom_call.1} parent=15 // pred_fallthru
          _
      $region16: #{tpu_custom_call.1} parent=5 // pred_fallthru
        _
      %p147 = scmp.le.s32.totalorder 1, %s15
      %p148 = scmp.lt.s32.totalorder %s15, 3
      %p149 = pnand %p147, %p148
      %p150 = pneg %p149
      // Predicated region
      $region21: #{tpu_custom_call.1} parent=5 // pred_check
        _
      $region22: #{tpu_custom_call.1} parent=5 // pred_check_branch
        %152 = sbr.rel (%p149) target = $region24
      $region23: #{tpu_custom_call.1} parent=5 // pred_region
        %s153 = ssub.s32 %s15, 1
        %s154 = sand.u32 %s42, 1
        %s155 = scalar_lea.sflag [#allocation3], %s154
        %s156 = sand.u32 %s42, 1
        %s157 = smul.addr %s156, 24
        %s158 = scalar_lea.vmem [#allocation2], %s157
        // Predicated region
        $region25: #{tpu_custom_call.1} parent=23 // pred_check
          %p159 = pneg %p55
        $region26: #{tpu_custom_call.1} parent=23 // pred_check_branch
          %161 = sbr.rel (%p159) target = $region28
        $region27: #{tpu_custom_call.1} parent=23 // pred_region
          %162 = dma.done %s155, 384
        $region28: #{tpu_custom_call.1} parent=23 // pred_fallthru
          _
        %s163 = sand.u32 %s42, 1
        %s164 = scalar_lea.sflag [#allocation3], %s163
        %s165 = sand.u32 %s42, 1
        %s166 = smul.addr %s165, 24
        %s167 = scalar_lea.vmem [#allocation2], %s166
        %p168 = pneg %p55
        %p169 = pneg %p52
        %p170 = pneg %p81
        %p171 = pneg %p78
        %p172 = scmp.lt.s32.totalorder %s24, 1
        %s173 = scalar_select %p172, %s24, 1
        %s174 = smul.addr %s173, 8
        %s175 = scalar_lea.vmem %s1, %s174
        %p176 = pneg %p107
        %p177 = pneg %p104
        %s178 = sand.u32 %s94, 1
        %s179 = scalar_lea.sflag [#allocation4], %s178
        %s180 = sand.u32 %s94, 1
        %s181 = smul.addr %s180, 8
        %s182 = scalar_lea.vmem [#allocation5], %s181
        %s183 = smul.u32 3, %s25
        %p184 = scmp.lt.s32.totalorder %s24, 1
        %s185 = scalar_select %p184, %s24, 1
        %s186 = smul.addr %s185, 8
        %s187 = scalar_lea.vmem %s1, %s186
        %p188 = scmp.eq.s32.totalorder %s25, 0
        // Predicated region
        $region29: #{tpu_custom_call.1} parent=23 // pred_check
          %p189 = pneg %p188
        $region30: #{tpu_custom_call.1} parent=23 // pred_check_branch
          %191 = sbr.rel (%p189) target = $region32
        $region31: #{tpu_custom_call.1} parent=23 // pred_region
          %vm192 = vcmask 7168
          %193 = vst.msk [vmem:[%s187] sm:$0xff] %vm192, 0.0
          %vm194 = vcmask 64512
          %195 = vst.msk [vmem:[%s182] sm:$0xff] %vm194, 0.0
        $region32: #{tpu_custom_call.1} parent=23 // pred_fallthru
          _
        %v196 = vld [vmem:[%s158] sm:$0xff]
        %v197 = vld [vmem:[%s158 + $0x8] sm:$0xff]
        %v198 = vld [vmem:[%s158 + $0x10] sm:$0xff]
        %v199 = vld [vmem:[%s187] sm:$0xff]
        %v200 = vadd.f32 %v196, %v197
        %v201 = vadd.f32 %v200, %v198
        %202 = vadd.xlane.f32.xlu0 %v201
        %v203 = vpop.xlane.xlu0 %202
        %v204 = vadd.f32 %v199, %v203
        %vm205 = vcmask 7168
        %206 = vst.msk [vmem:[%s187] sm:$0xff] %vm205, %v204
        %v207 = vld [vmem:[%s182] sm:$0xff]
        %208 = vmatprep.subr.mxu0 %v197
        %209 = vmatpush1.xpose.msra.mxu0 %v196
        %210 = vmatprep.subr.mxu0 0.0
        %211 = vmatpush1.xpose.msra.mxu0 0.0
        %212 = vmatprep.subr.mxu0 0.0
        %213 = vmatpush1.xpose.msra.mxu0 0.0
        %214 = vmatprep.subr.mxu0 0.0
        %215 = vmatpush1.xpose.msra.mxu0 0.0
        %216 = vmatprep.subr.mxu0 0.0
        %217 = vmatpush1.xpose.msra.mxu0 0.0
        %218 = vmatprep.subr.mxu0 0.0
        %219 = vmatpush1.xpose.msra.mxu0 0.0
        %220 = vmatprep.subr.mxu0 0.0
        %221 = vmatpush1.xpose.msra.mxu0 0.0
        %222 = vmatprep.subr.mxu0 0.0
        %223 = vmatpush1.xpose.msra.mxu0 0.0
        %224 = vmatprep.subr.mxu0 0.0
        %225 = vmatpush1.xpose.msra.mxu0 0.0
        %226 = vmatprep.subr.mxu0 0.0
        %227 = vmatpush1.xpose.msra.mxu0 0.0
        %228 = vmatprep.subr.mxu0 0.0
        %229 = vmatpush1.xpose.msra.mxu0 0.0
        %230 = vmatprep.subr.mxu0 0.0
        %231 = vmatpush1.xpose.msra.mxu0 0.0
        %232 = vmatprep.subr.mxu0 0.0
        %233 = vmatpush1.xpose.msra.mxu0 0.0
        %234 = vmatprep.subr.mxu0 0.0
        %235 = vmatpush1.xpose.msra.mxu0 0.0
        %236 = vmatprep.subr.mxu0 0.0
        %237 = vmatpush1.xpose.msra.mxu0 0.0
        %238 = vmatprep.subr.mxu0 0.0
        %239 = vmatpush1.xpose.msra.mxu0 0.0
        %240 = vmatprep.subr.mxu0 0.0
        %241 = vmatpush1.xpose.msra.mxu0 0.0
        %242 = vmatprep.subr.mxu0 0.0
        %243 = vmatpush1.xpose.msra.mxu0 0.0
        %244 = vmatprep.subr.mxu0 0.0
        %245 = vmatpush1.xpose.msra.mxu0 0.0
        %246 = vmatprep.subr.mxu0 0.0
        %247 = vmatpush1.xpose.msra.mxu0 0.0
        %248 = vmatprep.subr.mxu0 0.0
        %249 = vmatpush1.xpose.msra.mxu0 0.0
        %250 = vmatprep.subr.mxu0 0.0
        %251 = vmatpush1.xpose.msra.mxu0 0.0
        %252 = vmatprep.subr.mxu0 0.0
        %253 = vmatpush1.xpose.msra.mxu0 0.0
        %254 = vmatprep.subr.mxu0 0.0
        %255 = vmatpush1.xpose.msra.mxu0 0.0
        %256 = vmatprep.subr.mxu0 0.0
        %257 = vmatpush1.xpose.msra.mxu0 0.0
        %258 = vmatprep.subr.mxu0 0.0
        %259 = vmatpush1.xpose.msra.mxu0 0.0
        %260 = vmatprep.subr.mxu0 0.0
        %261 = vmatpush1.xpose.msra.mxu0 0.0
        %262 = vmatprep.subr.mxu0 0.0
        %263 = vmatpush1.xpose.msra.mxu0 0.0
        %264 = vmatprep.subr.mxu0 0.0
        %265 = vmatpush1.xpose.msra.mxu0 0.0
        %266 = vmatprep.subr.mxu0 0.0
        %267 = vmatpush1.xpose.msra.mxu0 0.0
        %268 = vmatprep.subr.mxu0 0.0
        %269 = vmatpush1.xpose.msra.mxu0 0.0
        %270 = vmatprep.subr.mxu0 0.0
        %271 = vmatpush1.xpose.msra.mxu0 0.0
        %272 = vmatprep.mubr.f32.mxu0 %v197
        %273 = vmatmul.mubr.f32.gmra.mrb[0].mxu0 %v196
        %v274 = vpop.f32.mrb[0].mxu0
        %v275 = vadd.f32 0.0, %v274
        %v276 = vpop.f32.mrb[0].mxu0
        %277 = vdwg.mxu0
        %278 = vmatprep.subr.mxu0 0.0
        %279 = vmatpush1.xpose.msra.mxu0 %v198
        %280 = vmatprep.subr.mxu0 0.0
        %281 = vmatpush1.xpose.msra.mxu0 0.0
        %282 = vmatprep.subr.mxu0 0.0
        %283 = vmatpush1.xpose.msra.mxu0 0.0
        %284 = vmatprep.subr.mxu0 0.0
        %285 = vmatpush1.xpose.msra.mxu0 0.0
        %286 = vmatprep.subr.mxu0 0.0
        %287 = vmatpush1.xpose.msra.mxu0 0.0
        %288 = vmatprep.subr.mxu0 0.0
        %289 = vmatpush1.xpose.msra.mxu0 0.0
        %290 = vmatprep.subr.mxu0 0.0
        %291 = vmatpush1.xpose.msra.mxu0 0.0
        %292 = vmatprep.subr.mxu0 0.0
        %293 = vmatpush1.xpose.msra.mxu0 0.0
        %294 = vmatprep.subr.mxu0 0.0
        %295 = vmatpush1.xpose.msra.mxu0 0.0
        %296 = vmatprep.subr.mxu0 0.0
        %297 = vmatpush1.xpose.msra.mxu0 0.0
        %298 = vmatprep.subr.mxu0 0.0
        %299 = vmatpush1.xpose.msra.mxu0 0.0
        %300 = vmatprep.subr.mxu0 0.0
        %301 = vmatpush1.xpose.msra.mxu0 0.0
        %302 = vmatprep.subr.mxu0 0.0
        %303 = vmatpush1.xpose.msra.mxu0 0.0
        %304 = vmatprep.subr.mxu0 0.0
        %305 = vmatpush1.xpose.msra.mxu0 0.0
        %306 = vmatprep.subr.mxu0 0.0
        %307 = vmatpush1.xpose.msra.mxu0 0.0
        %308 = vmatprep.subr.mxu0 0.0
        %309 = vmatpush1.xpose.msra.mxu0 0.0
        %310 = vmatprep.subr.mxu0 0.0
        %311 = vmatpush1.xpose.msra.mxu0 0.0
        %312 = vmatprep.subr.mxu0 0.0
        %313 = vmatpush1.xpose.msra.mxu0 0.0
        %314 = vmatprep.subr.mxu0 0.0
        %315 = vmatpush1.xpose.msra.mxu0 0.0
        %316 = vmatprep.subr.mxu0 0.0
        %317 = vmatpush1.xpose.msra.mxu0 0.0
        %318 = vmatprep.subr.mxu0 0.0
        %319 = vmatpush1.xpose.msra.mxu0 0.0
        %320 = vmatprep.subr.mxu0 0.0
        %321 = vmatpush1.xpose.msra.mxu0 0.0
        %322 = vmatprep.subr.mxu0 0.0
        %323 = vmatpush1.xpose.msra.mxu0 0.0
        %324 = vmatprep.subr.mxu0 0.0
        %325 = vmatpush1.xpose.msra.mxu0 0.0
        %326 = vmatprep.subr.mxu0 0.0
        %327 = vmatpush1.xpose.msra.mxu0 0.0
        %328 = vmatprep.subr.mxu0 0.0
        %329 = vmatpush1.xpose.msra.mxu0 0.0
        %330 = vmatprep.subr.mxu0 0.0
        %331 = vmatpush1.xpose.msra.mxu0 0.0
        %332 = vmatprep.subr.mxu0 0.0
        %333 = vmatpush1.xpose.msra.mxu0 0.0
        %334 = vmatprep.subr.mxu0 0.0
        %335 = vmatpush1.xpose.msra.mxu0 0.0
        %336 = vmatprep.subr.mxu0 0.0
        %337 = vmatpush1.xpose.msra.mxu0 0.0
        %338 = vmatprep.subr.mxu0 0.0
        %339 = vmatpush1.xpose.msra.mxu0 0.0
        %340 = vmatprep.subr.mxu0 0.0
        %341 = vmatpush1.xpose.msra.mxu0 0.0
        %342 = vmatprep.mubr.f32.mxu0 0.0
        %343 = vmatmul.mubr.f32.gmra.mrb[0].mxu0 %v198
        %v344 = vpop.f32.mrb[0].mxu0
        %v345 = vadd.f32 %v275, %v344
        %v346 = vpop.f32.mrb[0].mxu0
        %347 = vdwg.mxu0
        %v348 = vadd.f32 %v207, %v345
        %vm349 = vcmask 64512
        %350 = vst.msk [vmem:[%s182] sm:$0xff] %vm349, %v348
        %p351 = scmp.lt.s32.totalorder %s24, 1
        %s352 = scalar_select %p351, %s24, 1
        %s353 = smul.addr %s352, 8
        %s354 = scalar_lea.vmem %s1, %s353
        %s355 = sand.u32 %s94, 1
        %s356 = scalar_lea.sflag [#allocation4], %s355
        %s357 = sand.u32 %s94, 1
        %s358 = smul.addr %s357, 8
        %s359 = scalar_lea.vmem [#allocation5], %s358
        // Predicated region
        $region33: #{tpu_custom_call.1} parent=23 // pred_check
          %p360 = pneg %p78
        $region34: #{tpu_custom_call.1} parent=23 // pred_check_branch
          %362 = sbr.rel (%p360) target = $region36
        $region35: #{tpu_custom_call.1} parent=23 // pred_region
          _
        $region36: #{tpu_custom_call.1} parent=23 // pred_fallthru
          _
        // Predicated region
        $region37: #{tpu_custom_call.1} parent=23 // pred_check
          %p363 = pneg %p104
        $region38: #{tpu_custom_call.1} parent=23 // pred_check_branch
          %365 = sbr.rel (%p363) target = $region40
        $region39: #{tpu_custom_call.1} parent=23 // pred_region
          %s367 = ssub.s32 128, 128
          %368 = vsyncadd %s356, %s367
          %s369 = smul.addr %s24, 128
          %s370 = scalar_lea.hbm %s2, %s369
          %s372 = sshll.u32 %s359, 4
          %s373 = int_to_ptr.vmem [resolvable:$true] %s372
          %375 = dma.vmem_to_hbm [thread:$0]  %s373, 128, %s370, %s356
        $region40: #{tpu_custom_call.1} parent=23 // pred_fallthru
          _
      $region24: #{tpu_custom_call.1} parent=5 // pred_fallthru
        _
      %p376 = scmp.le.s32.totalorder 2, %s15
      // Predicated region
      $region41: #{tpu_custom_call.1} parent=5 // pred_check
        %p377 = pneg %p376
      $region42: #{tpu_custom_call.1} parent=5 // pred_check_branch
        %379 = sbr.rel (%p377) target = $region44
      $region43: #{tpu_custom_call.1} parent=5 // pred_region
        %s380 = ssub.s32 %s15, 2
        // Predicated region
        $region45: #{tpu_custom_call.1} parent=43 // pred_check
          %p381 = pneg %p84
        $region46: #{tpu_custom_call.1} parent=43 // pred_check_branch
          %383 = sbr.rel (%p381) target = $region48
        $region47: #{tpu_custom_call.1} parent=43 // pred_region
          %p384 = scmp.lt.s32.totalorder %s26, 1
          %s385 = scalar_select %p384, %s26, 1
          %s386 = smul.addr %s385, 8
          %s387 = scalar_lea.vmem %s1, %s386
        $region48: #{tpu_custom_call.1} parent=43 // pred_fallthru
          _
        // Predicated region
        $region49: #{tpu_custom_call.1} parent=43 // pred_check
          %p388 = pneg %p110
        $region50: #{tpu_custom_call.1} parent=43 // pred_check_branch
          %390 = sbr.rel (%p388) target = $region52
        $region51: #{tpu_custom_call.1} parent=43 // pred_region
          %s391 = sand.u32 %s95, 1
          %s392 = scalar_lea.sflag [#allocation4], %s391
          %s393 = sand.u32 %s95, 1
          %s394 = smul.addr %s393, 8
          %s395 = scalar_lea.vmem [#allocation5], %s394
          %396 = dma.done %s392, 128
        $region52: #{tpu_custom_call.1} parent=43 // pred_fallthru
          _
      $region44: #{tpu_custom_call.1} parent=5 // pred_fallthru
        _
    $region6: #{tpu_custom_call.1} parent=1 // loop_footer
      %s19 = sadd.s32 1, %s15
    $region7: #{tpu_custom_call.1} parent=1 // loop_footer_branch
      %14 = sbr.rel target = $region3
    $region8: #{tpu_custom_call.1} parent=1 // loop_exit
      _
    %397 = vsyncpa [#allocation3], 1
    %s398 = scalar_lea.sflag [#allocation3], 1
    %399 = vsyncpa %s398, 1
    %400 = vsyncpa [#allocation4], 1
    %s401 = scalar_lea.sflag [#allocation4], 1
    %402 = vsyncpa %s401, 1

</llo_original>
